<compile_context>
chip_gen: v5e
topology: v5e:2x2
jax: 0.10.0
libtpu: 0.0.40
codegen_flags: <defaults>
</compile_context>

<pallas_src>
import jax
import jax.numpy as jnp
from jax.experimental import pallas as pl
from jax.experimental.pallas import tpu as pltpu


def _deconv_kernel(x_ref, w_ref, p_ref, shift_ref, o_ref):
    # x_ref:     (1, Cin, Ht*W)           current (batch, H-tile) input slab
    # w_ref:     (K*K, Cout, Cin)         per-tap weights (BN scale folded in)
    # p_ref:     (K*K, Ht*W, Ht*K*W*K)    one-hot tap-placement matrices
    # shift_ref: (Cout, 1)                bias / folded BN shift
    # o_ref:     (1, Cout, Ht*K*W*K)      output slab, flat NCHW order
    x = x_ref[0]                                   # (Cin, Ht*W)
    n_taps = w_ref.shape[0]
    acc = None
    for t in range(n_taps):                        # static K*K loop
        y_t = jnp.dot(w_ref[t], x, preferred_element_type=jnp.float32)
        c_t = jnp.dot(y_t, p_ref[t], preferred_element_type=jnp.float32)
        acc = c_t if acc is None else acc + c_t
    acc = acc + shift_ref[...]
    o_ref[0] = jnp.maximum(acc, 0.0).astype(o_ref.dtype)


def _pick_h_tile(H, W, K):
    # Smallest divisor Ht of H such that the block minor dims (Ht*W and
    # Ht*K*W*K) are multiples of 128 -> unmasked, lane-dense loads/stores and
    # the smallest possible placement matrices.  Fall back to full H (block
    # equals the full dim, always legal).
    for cand in range(1, H + 1):
        if H % cand == 0 and (cand * W) % 128 == 0:
            return cand
    return H


def basic_deconv(x, weight, bias=None, bn_params=None, *, kernel_size, stride,
                 use_bn=False, eps=1e-5):
    """Forward pass of BasicDeconv.

    x:      (N, Cin, H, W)      float32, NCHW
    weight: (Cin, Cout, K, K)   PyTorch ConvTranspose2d layout
    bias:   (Cout,) or None     used when use_bn=False
    bn_params: dict(gamma, beta, mean, var), each (Cout,)  (eval-mode BN)
    """
    assert kernel_size == stride, "only non-overlapping deconv supported"
    N, Cin, H, W = x.shape
    Cin_w, Cout, K, K2 = weight.shape
    assert Cin_w == Cin and K == kernel_size and K2 == K

    # --- Fold bias / eval-mode BN into per-channel scale & shift -------------
    if use_bn:
        g = bn_params["gamma"].astype(jnp.float32)
        b = bn_params["beta"].astype(jnp.float32)
        m = bn_params["mean"].astype(jnp.float32)
        v = bn_params["var"].astype(jnp.float32)
        scale = g / jnp.sqrt(v + eps)                       # (Cout,)
        shift = b - m * scale                               # (Cout,)
    else:
        scale = jnp.ones((Cout,), jnp.float32)
        shift = (bias if bias is not None
                 else jnp.zeros((Cout,), jnp.float32)).astype(jnp.float32)

    # Tap-major weights with the scale folded in: wts[t, co, ci] (t = ki*K+kj).
    wts = (jnp.transpose(weight, (2, 3, 1, 0)).reshape(K * K, Cout, Cin)
           * scale[None, :, None]).astype(jnp.float32)
    shift2 = shift.reshape(Cout, 1).astype(jnp.float32)

    # --- Tiling --------------------------------------------------------------
    Ht = _pick_h_tile(H, W, K)
    HWt = Ht * W                 # matmul RHS lanes per step
    OUTt = Ht * K * W * K        # output lanes stored per (co, step)

    # One-hot placement matrices:
    #   P[t, i*W + j, i*(K*W*K) + ki*(W*K) + j*K + kj] = 1,  t = ki*K + kj
    t_idx = jnp.arange(K * K)
    ki = (t_idx // K)[:, None]                               # (T, 1)
    kj = (t_idx % K)[:, None]
    r = jnp.arange(HWt)[None, :]                             # (1, R)
    il = r // W
    jj = r % W
    cols = il * (K * W * K) + ki * (W * K) + jj * K + kj     # (T, R)
    P = (cols[:, :, None] == jnp.arange(OUTt)[None, None, :]
         ).astype(jnp.float32)                               # (T, R, OUTt)

    x2 = x.reshape(N, Cin, H * W).astype(jnp.float32)        # free reshape

    grid = (N, H // Ht)
    out_elems = N * Cout * H * K * W * K
    flops = 2 * N * (H // Ht) * (K * K) * (Cout * Cin * HWt + Cout * HWt * OUTt)
    bytes_accessed = 4 * (x2.size + wts.size + P.size + shift2.size + out_elems)

    out_flat = pl.pallas_call(
        _deconv_kernel,
        out_shape=jax.ShapeDtypeStruct((N, Cout, H * K * W * K), jnp.float32),
        grid_spec=pltpu.PrefetchScalarGridSpec(
            num_scalar_prefetch=0,
            grid=grid,
            in_specs=[
                pl.BlockSpec((1, Cin, HWt), lambda n, h: (n, 0, h)),
                pl.BlockSpec((K * K, Cout, Cin), lambda n, h: (0, 0, 0)),
                pl.BlockSpec((K * K, HWt, OUTt), lambda n, h: (0, 0, 0)),
                pl.BlockSpec((Cout, 1), lambda n, h: (0, 0)),
            ],
            out_specs=pl.BlockSpec((1, Cout, OUTt), lambda n, h: (n, 0, h)),
        ),
        compiler_params=pltpu.CompilerParams(
            dimension_semantics=("parallel", "parallel")),
        cost_estimate=pl.CostEstimate(
            flops=flops, transcendentals=0, bytes_accessed=bytes_accessed),
    )(x2, wts, P, shift2)

    # Flat index per (n, co) is i*K*W*K + ki*W*K + j*K + kj == row-major
    # (H*K, W*K), so this reshape is a free bitcast (no HBM traffic).
    return out_flat.reshape(N, Cout, H * K, W * K)


def _reference(x, weight, bias, kernel_size, stride):
    # Plain-JAX reference for ConvTranspose2d (K == stride) + bias + ReLU.
    N, Cin, H, W = x.shape
    _, Cout, K, _ = weight.shape
    y = jnp.einsum("ncij,cokl->noikjl", x, weight,
                   precision=jax.lax.Precision.HIGHEST)      # (N,Cout,H,K,W,K)
    y = y.reshape(N, Cout, H * K, W * K)
    y = y + bias[None, :, None, None]
    return jnp.maximum(y, 0.0)


if __name__ == "__main__":
    # BasicDeconv(in_channels=4, out_channels=8, kernel_size=2, stride=2)
    N, Cin, Cout, H, W, K = 2, 4, 8, 16, 16, 2
    key = jax.random.PRNGKey(0)
    kx, kw, kb, kg, kbe, km, kv = jax.random.split(key, 7)

    x = jax.random.normal(kx, (N, Cin, H, W), dtype=jnp.float32)
    weight = jax.random.normal(kw, (Cin, Cout, K, K), dtype=jnp.float32) * 0.1
    bias = jax.random.normal(kb, (Cout,), dtype=jnp.float32) * 0.1

    # --- use_bn=False path ---------------------------------------------------
    out = basic_deconv(x, weight, bias=bias, kernel_size=K, stride=K,
                       use_bn=False)
    out = jax.block_until_ready(out)
    ref = _reference(x, weight, bias, K, K)
    assert out.shape == (N, Cout, H * K, W * K), out.shape
    assert jnp.allclose(out, ref, atol=1e-4, rtol=1e-4), "mismatch (no BN)"

    # --- use_bn=True path (eval-mode BN folded into weight/shift) ------------
    bn = dict(
        gamma=1.0 + 0.1 * jax.random.normal(kg, (Cout,), dtype=jnp.float32),
        beta=0.1 * jax.random.normal(kbe, (Cout,), dtype=jnp.float32),
        mean=0.1 * jax.random.normal(km, (Cout,), dtype=jnp.float32),
        var=jnp.abs(jax.random.normal(kv, (Cout,), dtype=jnp.float32)) + 0.5,
    )
    out_bn = basic_deconv(x, weight, bn_params=bn, kernel_size=K, stride=K,
                          use_bn=True)
    out_bn = jax.block_until_ready(out_bn)
    sc = bn["gamma"] / jnp.sqrt(bn["var"] + 1e-5)
    sh = bn["beta"] - bn["mean"] * sc
    y = jnp.einsum("ncij,cokl->noikjl", x, weight,
                   precision=jax.lax.Precision.HIGHEST).reshape(
                       N, Cout, H * K, W * K)
    ref_bn = jnp.maximum(y * sc[None, :, None, None] + sh[None, :, None, None],
                         0.0)
    assert jnp.allclose(out_bn, ref_bn, atol=1e-4, rtol=1e-4), "mismatch (BN)"

    print("KERNEL_OK")
</pallas_src>

<mosaic_0001>
module attributes {stable_mosaic.version = 11 : i64} {
  func.func @_deconv_kernel(%arg0: i32, %arg1: i32, %arg2: memref<1x4x128xf32, #tpu.memory_space<vmem>>, %arg3: memref<4x8x4xf32, #tpu.memory_space<vmem>>, %arg4: memref<4x128x512xf32, #tpu.memory_space<vmem>>, %arg5: memref<8x1xf32, #tpu.memory_space<vmem>>, %arg6: memref<1x8x512xf32, #tpu.memory_space<vmem>>) attributes {dimension_semantics = [#tpu.dimension_semantics<parallel>, #tpu.dimension_semantics<parallel>], iteration_bounds = array<i64: 2, 2>, scalar_prefetch = 0 : i64, scratch_operands = 0 : i64, tpu.core_type = #tpu.core_type<tc>, window_params = [{transform_indices = @transform_0, window_bounds = array<i64: 1, 4, 128>}, {pipeline_mode = #tpu.pipeline_mode<synchronous>, transform_indices = @transform_1, window_bounds = array<i64: 4, 8, 4>}, {pipeline_mode = #tpu.pipeline_mode<synchronous>, transform_indices = @transform_2, window_bounds = array<i64: 4, 128, 512>}, {pipeline_mode = #tpu.pipeline_mode<synchronous>, transform_indices = @transform_3, window_bounds = array<i64: 8, 1>}, {transform_indices = @transform_4, window_bounds = array<i64: 1, 8, 512>}]} {
    %c0 = arith.constant 0 : index
    %c0_0 = arith.constant 0 : index
    %c0_1 = arith.constant 0 : index
    %0 = vector.load %arg2[%c0, %c0_0, %c0_1] : memref<1x4x128xf32, #tpu.memory_space<vmem>>, vector<1x4x128xf32>
    %1 = vector.shape_cast %0 : vector<1x4x128xf32> to vector<4x128xf32>
    %c0_2 = arith.constant 0 : index
    %c0_3 = arith.constant 0 : index
    %c0_4 = arith.constant 0 : index
    %2 = vector.load %arg3[%c0_2, %c0_3, %c0_4] : memref<4x8x4xf32, #tpu.memory_space<vmem>>, vector<1x8x4xf32>
    %3 = vector.shape_cast %2 : vector<1x8x4xf32> to vector<8x4xf32>
    %cst = arith.constant dense<0.000000e+00> : vector<8x128xf32>
    %4 = tpu.matmul %3, %1, %cst {dimension_numbers = #tpu.dot_dimension_numbers<[1], [0], [0], [1], [0, 0, 1, 1], [], []>} : vector<8x4xf32>, vector<4x128xf32>, vector<8x128xf32> -> vector<8x128xf32>
    %c0_5 = arith.constant 0 : index
    %c0_6 = arith.constant 0 : index
    %c0_7 = arith.constant 0 : index
    %5 = vector.load %arg4[%c0_5, %c0_6, %c0_7] : memref<4x128x512xf32, #tpu.memory_space<vmem>>, vector<1x128x512xf32>
    %6 = vector.shape_cast %5 : vector<1x128x512xf32> to vector<128x512xf32>
    %cst_8 = arith.constant dense<0.000000e+00> : vector<8x512xf32>
    %7 = tpu.matmul %4, %6, %cst_8 {dimension_numbers = #tpu.dot_dimension_numbers<[1], [0], [0], [1], [0, 0, 1, 1], [], []>} : vector<8x128xf32>, vector<128x512xf32>, vector<8x512xf32> -> vector<8x512xf32>
    %c1 = arith.constant 1 : index
    %c0_9 = arith.constant 0 : index
    %c0_10 = arith.constant 0 : index
    %8 = vector.load %arg3[%c1, %c0_9, %c0_10] : memref<4x8x4xf32, #tpu.memory_space<vmem>>, vector<1x8x4xf32>
    %9 = vector.shape_cast %8 : vector<1x8x4xf32> to vector<8x4xf32>
    %cst_11 = arith.constant dense<0.000000e+00> : vector<8x128xf32>
    %10 = tpu.matmul %9, %1, %cst_11 {dimension_numbers = #tpu.dot_dimension_numbers<[1], [0], [0], [1], [0, 0, 1, 1], [], []>} : vector<8x4xf32>, vector<4x128xf32>, vector<8x128xf32> -> vector<8x128xf32>
    %c1_12 = arith.constant 1 : index
    %c0_13 = arith.constant 0 : index
    %c0_14 = arith.constant 0 : index
    %11 = vector.load %arg4[%c1_12, %c0_13, %c0_14] : memref<4x128x512xf32, #tpu.memory_space<vmem>>, vector<1x128x512xf32>
    %12 = vector.shape_cast %11 : vector<1x128x512xf32> to vector<128x512xf32>
    %cst_15 = arith.constant dense<0.000000e+00> : vector<8x512xf32>
    %13 = tpu.matmul %10, %12, %cst_15 {dimension_numbers = #tpu.dot_dimension_numbers<[1], [0], [0], [1], [0, 0, 1, 1], [], []>} : vector<8x128xf32>, vector<128x512xf32>, vector<8x512xf32> -> vector<8x512xf32>
    %14 = arith.addf %7, %13 : vector<8x512xf32>
    %c2 = arith.constant 2 : index
    %c0_16 = arith.constant 0 : index
    %c0_17 = arith.constant 0 : index
    %15 = vector.load %arg3[%c2, %c0_16, %c0_17] : memref<4x8x4xf32, #tpu.memory_space<vmem>>, vector<1x8x4xf32>
    %16 = vector.shape_cast %15 : vector<1x8x4xf32> to vector<8x4xf32>
    %cst_18 = arith.constant dense<0.000000e+00> : vector<8x128xf32>
    %17 = tpu.matmul %16, %1, %cst_18 {dimension_numbers = #tpu.dot_dimension_numbers<[1], [0], [0], [1], [0, 0, 1, 1], [], []>} : vector<8x4xf32>, vector<4x128xf32>, vector<8x128xf32> -> vector<8x128xf32>
    %c2_19 = arith.constant 2 : index
    %c0_20 = arith.constant 0 : index
    %c0_21 = arith.constant 0 : index
    %18 = vector.load %arg4[%c2_19, %c0_20, %c0_21] : memref<4x128x512xf32, #tpu.memory_space<vmem>>, vector<1x128x512xf32>
    %19 = vector.shape_cast %18 : vector<1x128x512xf32> to vector<128x512xf32>
    %cst_22 = arith.constant dense<0.000000e+00> : vector<8x512xf32>
    %20 = tpu.matmul %17, %19, %cst_22 {dimension_numbers = #tpu.dot_dimension_numbers<[1], [0], [0], [1], [0, 0, 1, 1], [], []>} : vector<8x128xf32>, vector<128x512xf32>, vector<8x512xf32> -> vector<8x512xf32>
    %21 = arith.addf %14, %20 : vector<8x512xf32>
    %c3 = arith.constant 3 : index
    %c0_23 = arith.constant 0 : index
    %c0_24 = arith.constant 0 : index
    %22 = vector.load %arg3[%c3, %c0_23, %c0_24] : memref<4x8x4xf32, #tpu.memory_space<vmem>>, vector<1x8x4xf32>
    %23 = vector.shape_cast %22 : vector<1x8x4xf32> to vector<8x4xf32>
    %cst_25 = arith.constant dense<0.000000e+00> : vector<8x128xf32>
    %24 = tpu.matmul %23, %1, %cst_25 {dimension_numbers = #tpu.dot_dimension_numbers<[1], [0], [0], [1], [0, 0, 1, 1], [], []>} : vector<8x4xf32>, vector<4x128xf32>, vector<8x128xf32> -> vector<8x128xf32>
    %c3_26 = arith.constant 3 : index
    %c0_27 = arith.constant 0 : index
    %c0_28 = arith.constant 0 : index
    %25 = vector.load %arg4[%c3_26, %c0_27, %c0_28] : memref<4x128x512xf32, #tpu.memory_space<vmem>>, vector<1x128x512xf32>
    %26 = vector.shape_cast %25 : vector<1x128x512xf32> to vector<128x512xf32>
    %cst_29 = arith.constant dense<0.000000e+00> : vector<8x512xf32>
    %27 = tpu.matmul %24, %26, %cst_29 {dimension_numbers = #tpu.dot_dimension_numbers<[1], [0], [0], [1], [0, 0, 1, 1], [], []>} : vector<8x128xf32>, vector<128x512xf32>, vector<8x512xf32> -> vector<8x512xf32>
    %28 = arith.addf %21, %27 : vector<8x512xf32>
    %c0_30 = arith.constant 0 : index
    %c0_31 = arith.constant 0 : index
    %29 = vector.load %arg5[%c0_30, %c0_31] : memref<8x1xf32, #tpu.memory_space<vmem>>, vector<8x1xf32>
    %30 = vector.broadcast %29 : vector<8x1xf32> to vector<8x512xf32>
    %31 = arith.addf %28, %30 : vector<8x512xf32>
    %cst_32 = arith.constant 0.000000e+00 : f32
    %32 = vector.broadcast %cst_32 : f32 to vector<8x512xf32>
    %33 = arith.maximumf %31, %32 : vector<8x512xf32>
    %c0_33 = arith.constant 0 : index
    %c0_34 = arith.constant 0 : index
    %c0_35 = arith.constant 0 : index
    %34 = vector.load %arg6[%c0_33, %c0_34, %c0_35] : memref<1x8x512xf32, #tpu.memory_space<vmem>>, vector<1x8x512xf32>
    %35 = vector.shape_cast %34 : vector<1x8x512xf32> to vector<8x512xf32>
    %36 = vector.shape_cast %33 : vector<8x512xf32> to vector<1x8x512xf32>
    tpu.vector_store %arg6[%c0_33, %c0_34, %c0_35], %36 {strides = array<i32>} : memref<1x8x512xf32, #tpu.memory_space<vmem>>, vector<1x8x512xf32>,
    return
  }
  func.func @transform_0(%arg0: i32, %arg1: i32) -> (i32, i32, i32) {
    %c0_i32 = arith.constant 0 : i32
    %c0_i32_0 = arith.constant 0 : i32
    return %arg0, %c0_i32, %arg1 : i32, i32, i32
  }
  func.func @transform_1(%arg0: i32, %arg1: i32) -> (i32, i32, i32) {
    %c0_i32 = arith.constant 0 : i32
    %c0_i32_0 = arith.constant 0 : i32
    %c0_i32_1 = arith.constant 0 : i32
    %c0_i32_2 = arith.constant 0 : i32
    return %c0_i32, %c0_i32_0, %c0_i32_1 : i32, i32, i32
  }
  func.func @transform_2(%arg0: i32, %arg1: i32) -> (i32, i32, i32) {
    %c0_i32 = arith.constant 0 : i32
    %c0_i32_0 = arith.constant 0 : i32
    %c0_i32_1 = arith.constant 0 : i32
    %c0_i32_2 = arith.constant 0 : i32
    return %c0_i32, %c0_i32_0, %c0_i32_1 : i32, i32, i32
  }
  func.func @transform_3(%arg0: i32, %arg1: i32) -> (i32, i32) {
    %c0_i32 = arith.constant 0 : i32
    %c0_i32_0 = arith.constant 0 : i32
    %c0_i32_1 = arith.constant 0 : i32
    return %c0_i32, %c0_i32_0 : i32, i32
  }
  func.func @transform_4(%arg0: i32, %arg1: i32) -> (i32, i32, i32) {
    %c0_i32 = arith.constant 0 : i32
    %c0_i32_0 = arith.constant 0 : i32
    return %arg0, %c0_i32, %arg1 : i32, i32, i32
  }
}

</mosaic_0001>

<llo_original>
// kernel: tpu_custom_call.1
$region0: #{tpu_custom_call.1}
  #allocation0 [shape = 'u32[]', space=smem, size = 0x4, offset = 0x4, fixed_abs, tag = 'smem constant byte address 0x4 - core index']
  #allocation1 [shape = 'u32[72,128]{1,0:T(1,128)}', space=vmem, size = 0x9000, scoped, tag = 'internal scratch']
  %s0 = inlined_call_operand.vmem [shape: f32[2,4,256], index: 0, kind: input, shape index: {}]
  %s1 = inlined_call_operand.vmem [shape: f32[4,8,4], index: 1, kind: input, shape index: {}]
  %s2 = inlined_call_operand.hbm [shape: f32[4,128,512], index: 2, kind: input, shape index: {}]
  %s3 = inlined_call_operand.vmem [shape: f32[8,1], index: 3, kind: input, shape index: {}]
  %s4 = inlined_call_operand.hbm [shape: f32[2,8,1024], index: 4, kind: output, shape index: {}]
  %s5 = sld [smem:[#allocation0]]
  $region53: #{tpu_custom_call.1} parent=0
    _
  %s7 = ssub.s32 1, %s5
  %s8 = scalar_select 0, %s7, %s5
  $region1: #{tpu_custom_call.1} parent=0
    #allocation2 [shape = 'u8[1048576]{0}', space=vmem, size = 0x100000, scoped, tag = 'input window, operand 2, single buffered']
    #allocation3 [shape = 's32[2]{0}', space=sflag, size = 0x8, scoped, tag = 'scoped memory for tpu_custom_call.1']
    #allocation4 [shape = 's32[2]{0}', space=sflag, size = 0x8, scoped, tag = 'scoped memory for tpu_custom_call.1']
    #allocation5 [shape = 'u8[32768]{0}', space=vmem, size = 0x8000, scoped, tag = 'output window, operand 0']
    %9 = vsyncpa [#allocation3], 0
    %10 = vsyncpa [#allocation4], 0
    %s11 = scalar_lea.sflag [#allocation4], 1
    %12 = vsyncpa %s11, 0
    loop: start=0, step=1, limit=6
    $region2: #{tpu_custom_call.1} parent=1 // loop_pre_header
      _
    $region3: #{tpu_custom_call.1} parent=1 // loop_header
      %s14 = sphi 0, %s18
      %p15 = scmp.ge.s32.totalorder %s14, 6
      %s21 = sphi 0, %s33
      %s22 = sphi 0, %s29
      %s23 = sphi 0, %s21
      %s24 = sphi 0, %s22
      %s25 = sphi 0, %s23
      %s26 = sphi 0, %s24
      %s38 = sphi 0, %s40
      %s41 = sphi 0, %s38
      %s42 = sphi 0, %s41
      %s58 = sphi 0, %s42
      %s62 = sphi 0, %s62
      %s64 = sphi 0, %s62
      %s65 = sphi 0, %s64
      %s79 = sphi 0, %s65
      %s83 = sphi 0, %s83
      %s85 = sphi 0, %s83
      %s86 = sphi 0, %s85
      %s100 = sphi 0, %s86
      %s104 = sphi 0, %s104
      %s106 = sphi 0, %s104
      %s107 = sphi 0, %s106
      %s121 = sphi 0, %s107
      %s129 = sphi 0, %s131
      %s132 = sphi 0, %s129
      %s133 = sphi 0, %s132
      %s149 = sphi 0, %s133
    $region4: #{tpu_custom_call.1} parent=1 // loop_header_branch
      %17 = sbr.rel (%p15) target = $region8
    $region5: #{tpu_custom_call.1} parent=1 // loop_body
      %s19 = ssub.s32 %s14, 1
      %s20 = ssub.s32 %s14, 2
      %s27 = sadd.s32 1, %s22
      %p28 = scmp.ge.s32.totalorder %s27, 2
      %s29 = scalar_select %p28, 0, %s27
      %s30 = sadd.s32 1, %s21
      %s31 = scalar_select %p28, %s30, %s21
      %p32 = scmp.ge.s32.totalorder %s31, 2
      %s33 = scalar_select %p32, 0, %s31
      %s34 = ssub.s32 %s21, %s33
      %s35 = ssub.s32 %s22, %s29
      %s36 = sor.u32 %s34, %s35
      %p37 = scmp.eq.s32.totalorder %s36, 0
      %s39 = sadd.s32 %s38, 1
      %s40 = scalar_select %p37, %s38, %s39
      %p43 = pneg %p37
      %p44 = scmp.eq.s32.totalorder %s14, 3
      %p45 = por %p43, %p44
      %p46 = scmp.ne.s32.totalorder %s38, %s41
      %p47 = scmp.eq.s32.totalorder %s14, 0
      %p48 = por %p46, %p47
      %p49 = scmp.ne.s32.totalorder %s38, %s41
      %p50 = scmp.eq.s32.totalorder %s19, 3
      %p51 = por %p49, %p50
      %p52 = scmp.ne.s32.totalorder %s41, %s42
      %p53 = scmp.eq.s32.totalorder %s19, 0
      %p54 = por %p52, %p53
      %p55 = scmp.ne.s32.totalorder %s41, %s42
      %p56 = scmp.eq.s32.totalorder %s20, 3
      %p57 = por %p55, %p56
      %p59 = scmp.ne.s32.totalorder %s42, %s58
      %p60 = scmp.eq.s32.totalorder %s20, 0
      %p61 = por %p59, %p60
      %s63 = sadd.s32 %s62, 1
      %p66 = scmp.eq.s32.totalorder %s14, 3
      %p67 = scmp.ne.s32.totalorder %s62, %s64
      %p68 = scmp.eq.s32.totalorder %s14, 0
      %p69 = por %p67, %p68
      %p70 = scmp.ne.s32.totalorder %s62, %s64
      %p71 = scmp.eq.s32.totalorder %s19, 3
      %p72 = por %p70, %p71
      %p73 = scmp.ne.s32.totalorder %s64, %s65
      %p74 = scmp.eq.s32.totalorder %s19, 0
      %p75 = por %p73, %p74
      %p76 = scmp.ne.s32.totalorder %s64, %s65
      %p77 = scmp.eq.s32.totalorder %s20, 3
      %p78 = por %p76, %p77
      %p80 = scmp.ne.s32.totalorder %s65, %s79
      %p81 = scmp.eq.s32.totalorder %s20, 0
      %p82 = por %p80, %p81
      %s84 = sadd.s32 %s83, 1
      %p87 = scmp.eq.s32.totalorder %s14, 3
      %p88 = scmp.ne.s32.totalorder %s83, %s85
      %p89 = scmp.eq.s32.totalorder %s14, 0
      %p90 = por %p88, %p89
      %p91 = scmp.ne.s32.totalorder %s83, %s85
      %p92 = scmp.eq.s32.totalorder %s19, 3
      %p93 = por %p91, %p92
      %p94 = scmp.ne.s32.totalorder %s85, %s86
      %p95 = scmp.eq.s32.totalorder %s19, 0
      %p96 = por %p94, %p95
      %p97 = scmp.ne.s32.totalorder %s85, %s86
      %p98 = scmp.eq.s32.totalorder %s20, 3
      %p99 = por %p97, %p98
      %p101 = scmp.ne.s32.totalorder %s86, %s100
      %p102 = scmp.eq.s32.totalorder %s20, 0
      %p103 = por %p101, %p102
      %s105 = sadd.s32 %s104, 1
      %p108 = scmp.eq.s32.totalorder %s14, 3
      %p109 = scmp.ne.s32.totalorder %s104, %s106
      %p110 = scmp.eq.s32.totalorder %s14, 0
      %p111 = por %p109, %p110
      %p112 = scmp.ne.s32.totalorder %s104, %s106
      %p113 = scmp.eq.s32.totalorder %s19, 3
      %p114 = por %p112, %p113
      %p115 = scmp.ne.s32.totalorder %s106, %s107
      %p116 = scmp.eq.s32.totalorder %s19, 0
      %p117 = por %p115, %p116
      %p118 = scmp.ne.s32.totalorder %s106, %s107
      %p119 = scmp.eq.s32.totalorder %s20, 3
      %p120 = por %p118, %p119
      %p122 = scmp.ne.s32.totalorder %s107, %s121
      %p123 = scmp.eq.s32.totalorder %s20, 0
      %p124 = por %p122, %p123
      %s125 = ssub.s32 %s21, %s33
      %s126 = ssub.s32 %s22, %s29
      %s127 = sor.u32 %s125, %s126
      %p128 = scmp.eq.s32.totalorder %s127, 0
      %s130 = sadd.s32 %s129, 1
      %s131 = scalar_select %p128, %s129, %s130
      %p134 = pneg %p128
      %p135 = scmp.eq.s32.totalorder %s14, 3
      %p136 = por %p134, %p135
      %p137 = scmp.ne.s32.totalorder %s129, %s132
      %p138 = scmp.eq.s32.totalorder %s14, 0
      %p139 = por %p137, %p138
      %p140 = scmp.ne.s32.totalorder %s129, %s132
      %p141 = scmp.eq.s32.totalorder %s19, 3
      %p142 = por %p140, %p141
      %p143 = scmp.ne.s32.totalorder %s132, %s133
      %p144 = scmp.eq.s32.totalorder %s19, 0
      %p145 = por %p143, %p144
      %p146 = scmp.ne.s32.totalorder %s132, %s133
      %p147 = scmp.eq.s32.totalorder %s20, 3
      %p148 = por %p146, %p147
      %p150 = scmp.ne.s32.totalorder %s133, %s149
      %p151 = scmp.eq.s32.totalorder %s20, 0
      %p152 = por %p150, %p151
      %p153 = scmp.le.s32.totalorder 1, %s14
      %p154 = scmp.lt.s32.totalorder %s14, 5
      %p155 = pnand %p153, %p154
      %p156 = pneg %p155
      // Predicated region
      $region9: #{tpu_custom_call.1} parent=5 // pred_check
        _
      $region10: #{tpu_custom_call.1} parent=5 // pred_check_branch
        %158 = sbr.rel (%p155) target = $region12
      $region11: #{tpu_custom_call.1} parent=5 // pred_region
        %s159 = ssub.s32 %s14, 1
        // Predicated region
        $region13: #{tpu_custom_call.1} parent=11 // pred_check
          %p160 = pneg %p75
        $region14: #{tpu_custom_call.1} parent=11 // pred_check_branch
          %162 = sbr.rel (%p160) target = $region16
        $region15: #{tpu_custom_call.1} parent=11 // pred_region
          _
        $region16: #{tpu_custom_call.1} parent=11 // pred_fallthru
          _
        // Predicated region
        $region17: #{tpu_custom_call.1} parent=11 // pred_check
          %p163 = pneg %p96
        $region18: #{tpu_custom_call.1} parent=11 // pred_check_branch
          %165 = sbr.rel (%p163) target = $region20
        $region19: #{tpu_custom_call.1} parent=11 // pred_region
          %167 = vsyncadd [#allocation3], 0
          %s168 = sshll.u32 %s2, 4
          %s169 = int_to_ptr.hbm [resolvable:$true] %s168
          %s170 = sshll.u32 [#allocation2], 4
          %s171 = int_to_ptr.vmem [resolvable:$true] %s170
          %176 = dma.hbm_to_vmem [thread:$0]  %s169, 32768, %s171, [#allocation3], 512, 512, 32
        $region20: #{tpu_custom_call.1} parent=11 // pred_fallthru
          _
        // Predicated region
        $region21: #{tpu_custom_call.1} parent=11 // pred_check
          %p177 = pneg %p117
        $region22: #{tpu_custom_call.1} parent=11 // pred_check_branch
          %179 = sbr.rel (%p177) target = $region24
        $region23: #{tpu_custom_call.1} parent=11 // pred_region
          _
        $region24: #{tpu_custom_call.1} parent=11 // pred_fallthru
          _
      $region12: #{tpu_custom_call.1} parent=5 // pred_fallthru
        _
      %p180 = scmp.lt.s32.totalorder %s14, 4
      // Predicated region
      $region25: #{tpu_custom_call.1} parent=5 // pred_check
        %p181 = pneg %p180
      $region26: #{tpu_custom_call.1} parent=5 // pred_check_branch
        %183 = sbr.rel (%p181) target = $region28
      $region27: #{tpu_custom_call.1} parent=5 // pred_region
        // Predicated region
        $region29: #{tpu_custom_call.1} parent=27 // pred_check
          %p184 = pneg %p48
        $region30: #{tpu_custom_call.1} parent=27 // pred_check_branch
          %186 = sbr.rel (%p184) target = $region32
        $region31: #{tpu_custom_call.1} parent=27 // pred_region
          %p187 = scmp.lt.s32.totalorder %s21, 1
          %s188 = scalar_select %p187, %s21, 1
          %p189 = scmp.lt.s32.totalorder %s22, 1
          %s190 = scalar_select %p189, %s22, 1
          %s191 = smul.addr %s188, 2
          %s192 = sadd.s32 %s190, %s191
          %s193 = smul.addr %s192, 4
          %s194 = scalar_lea.vmem %s0, %s193
        $region32: #{tpu_custom_call.1} parent=27 // pred_fallthru
          _
      $region28: #{tpu_custom_call.1} parent=5 // pred_fallthru
        _
      %p195 = scmp.le.s32.totalorder 1, %s14
      %p196 = scmp.lt.s32.totalorder %s14, 5
      %p197 = pnand %p195, %p196
      %p198 = pneg %p197
      // Predicated region
      $region33: #{tpu_custom_call.1} parent=5 // pred_check
        _
      $region34: #{tpu_custom_call.1} parent=5 // pred_check_branch
        %200 = sbr.rel (%p197) target = $region36
      $region35: #{tpu_custom_call.1} parent=5 // pred_region
        %s201 = ssub.s32 %s14, 1
        // Predicated region
        $region37: #{tpu_custom_call.1} parent=35 // pred_check
          %p202 = pneg %p96
        $region38: #{tpu_custom_call.1} parent=35 // pred_check_branch
          %204 = sbr.rel (%p202) target = $region40
        $region39: #{tpu_custom_call.1} parent=35 // pred_region
          %206 = dma.done [#allocation3], 32768
        $region40: #{tpu_custom_call.1} parent=35 // pred_fallthru
          _
        %p207 = scmp.lt.s32.totalorder %s23, 1
        %s208 = scalar_select %p207, %s23, 1
        %p209 = scmp.lt.s32.totalorder %s24, 1
        %s210 = scalar_select %p209, %s24, 1
        %s211 = smul.addr %s208, 2
        %s212 = sadd.s32 %s210, %s211
        %s213 = smul.addr %s212, 4
        %s214 = scalar_lea.vmem %s0, %s213
        %p215 = pneg %p54
        %p216 = pneg %p51
        %p217 = pneg %p75
        %p218 = pneg %p72
        %p219 = pneg %p96
        %p220 = pneg %p93
        %p221 = pneg %p117
        %p222 = pneg %p114
        %p223 = pneg %p145
        %p224 = pneg %p142
        %s225 = sand.u32 %s132, 1
        %s226 = scalar_lea.sflag [#allocation4], %s225
        %s227 = sand.u32 %s132, 1
        %s228 = smul.addr %s227, 32
        %s229 = scalar_lea.vmem [#allocation5], %s228
        %p230 = scmp.lt.s32.totalorder %s23, 1
        %s231 = scalar_select %p230, %s23, 1
        %p232 = scmp.lt.s32.totalorder %s24, 1
        %s233 = scalar_select %p232, %s24, 1
        %s234 = smul.addr %s231, 2
        %s235 = sadd.s32 %s233, %s234
        %s236 = smul.addr %s235, 4
        %s237 = scalar_lea.vmem %s0, %s236
        %s238 = smul.u32 4, %s24
        %v239 = vld [vmem:[%s237] sm:$0xf]
        %v240 = vld [vmem:[%s1] sm:$0xff]
        %vm241 = vcmask 31744
        %v243 = vsel %vm241, %v240, 0
        %vm245 = vcmask 1043456
        %v247 = vsel %vm245, %v239, 0
        %249 = vmatpush.msra.mxu0 0.0
        %250 = vmatpush.msra.mxu0 0.0
        %251 = vmatpush.msra.mxu0 0.0
        %252 = vmatpush.msra.mxu0 0.0
        %253 = vmatpush.msra.mxu0 0.0
        %254 = vmatpush.msra.mxu0 0.0
        %255 = vmatpush.msra.mxu0 0.0
        %256 = vmatpush.msra.mxu0 0.0
        %257 = vmatpush.msra.mxu0 0.0
        %258 = vmatpush.msra.mxu0 0.0
        %259 = vmatpush.msra.mxu0 0.0
        %260 = vmatpush.msra.mxu0 0.0
        %261 = vmatpush.msra.mxu0 0.0
        %262 = vmatpush.msra.mxu0 0.0
        %263 = vmatpush.msra.mxu0 0.0
        %264 = vmatpush.msra.mxu0 %v247
        %265 = vmatmul.f32.gmra.mxu0 %v243
        %v266 = vpop.f32.mrf.mxu0
        %v267 = vadd.f32 0.0, %v266
        %268 = vdwg.mxu0
        %v269 = vld [vmem:[#allocation2] sm:$0xff]
        %v270 = vld [vmem:[#allocation2 + $0x8] sm:$0xff]
        %v271 = vld [vmem:[#allocation2 + $0x10] sm:$0xff]
        %v272 = vld [vmem:[#allocation2 + $0x18] sm:$0xff]
        %v273 = vld [vmem:[#allocation2 + $0x20] sm:$0xff]
        %v274 = vld [vmem:[#allocation2 + $0x28] sm:$0xff]
        %v275 = vld [vmem:[#allocation2 + $0x30] sm:$0xff]
        %v276 = vld [vmem:[#allocation2 + $0x38] sm:$0xff]
        %v277 = vld [vmem:[#allocation2 + $0x40] sm:$0xff]
        %v278 = vld [vmem:[#allocation2 + $0x48] sm:$0xff]
        %v279 = vld [vmem:[#allocation2 + $0x50] sm:$0xff]
        %v280 = vld [vmem:[#allocation2 + $0x58] sm:$0xff]
        %v281 = vld [vmem:[#allocation2 + $0x60] sm:$0xff]
        %v282 = vld [vmem:[#allocation2 + $0x68] sm:$0xff]
        %v283 = vld [vmem:[#allocation2 + $0x70] sm:$0xff]
        %v284 = vld [vmem:[#allocation2 + $0x78] sm:$0xff]
        %v285 = vld [vmem:[#allocation2 + $0x80] sm:$0xff]
        %v286 = vld [vmem:[#allocation2 + $0x88] sm:$0xff]
        %v287 = vld [vmem:[#allocation2 + $0x90] sm:$0xff]
        %v288 = vld [vmem:[#allocation2 + $0x98] sm:$0xff]
        %v289 = vld [vmem:[#allocation2 + $0xa0] sm:$0xff]
        %v290 = vld [vmem:[#allocation2 + $0xa8] sm:$0xff]
        %v291 = vld [vmem:[#allocation2 + $0xb0] sm:$0xff]
        %v292 = vld [vmem:[#allocation2 + $0xb8] sm:$0xff]
        %v293 = vld [vmem:[#allocation2 + $0xc0] sm:$0xff]
        %v294 = vld [vmem:[#allocation2 + $0xc8] sm:$0xff]
        %v295 = vld [vmem:[#allocation2 + $0xd0] sm:$0xff]
        %v296 = vld [vmem:[#allocation2 + $0xd8] sm:$0xff]
        %v297 = vld [vmem:[#allocation2 + $0xe0] sm:$0xff]
        %v298 = vld [vmem:[#allocation2 + $0xe8] sm:$0xff]
        %v299 = vld [vmem:[#allocation2 + $0xf0] sm:$0xff]
        %v300 = vld [vmem:[#allocation2 + $0xf8] sm:$0xff]
        %v301 = vld [vmem:[#allocation2 + $0x100] sm:$0xff]
        %v302 = vld [vmem:[#allocation2 + $0x108] sm:$0xff]
        %v303 = vld [vmem:[#allocation2 + $0x110] sm:$0xff]
        %v304 = vld [vmem:[#allocation2 + $0x118] sm:$0xff]
        %v305 = vld [vmem:[#allocation2 + $0x120] sm:$0xff]
        %v306 = vld [vmem:[#allocation2 + $0x128] sm:$0xff]
        %v307 = vld [vmem:[#allocation2 + $0x130] sm:$0xff]
        %v308 = vld [vmem:[#allocation2 + $0x138] sm:$0xff]
        %v309 = vld [vmem:[#allocation2 + $0x140] sm:$0xff]
        %v310 = vld [vmem:[#allocation2 + $0x148] sm:$0xff]
        %v311 = vld [vmem:[#allocation2 + $0x150] sm:$0xff]
        %v312 = vld [vmem:[#allocation2 + $0x158] sm:$0xff]
        %v313 = vld [vmem:[#allocation2 + $0x160] sm:$0xff]
        %v314 = vld [vmem:[#allocation2 + $0x168] sm:$0xff]
        %v315 = vld [vmem:[#allocation2 + $0x170] sm:$0xff]
        %v316 = vld [vmem:[#allocation2 + $0x178] sm:$0xff]
        %v317 = vld [vmem:[#allocation2 + $0x180] sm:$0xff]
        %v318 = vld [vmem:[#allocation2 + $0x188] sm:$0xff]
        %v319 = vld [vmem:[#allocation2 + $0x190] sm:$0xff]
        %v320 = vld [vmem:[#allocation2 + $0x198] sm:$0xff]
        %v321 = vld [vmem:[#allocation2 + $0x1a0] sm:$0xff]
        %v322 = vld [vmem:[#allocation2 + $0x1a8] sm:$0xff]
        %v323 = vld [vmem:[#allocation2 + $0x1b0] sm:$0xff]
        %v324 = vld [vmem:[#allocation2 + $0x1b8] sm:$0xff]
        %v325 = vld [vmem:[#allocation2 + $0x1c0] sm:$0xff]
        %v326 = vld [vmem:[#allocation2 + $0x1c8] sm:$0xff]
        %v327 = vld [vmem:[#allocation2 + $0x1d0] sm:$0xff]
        %v328 = vld [vmem:[#allocation2 + $0x1d8] sm:$0xff]
        %v329 = vld [vmem:[#allocation2 + $0x1e0] sm:$0xff]
        %v330 = vld [vmem:[#allocation2 + $0x1e8] sm:$0xff]
        %v331 = vld [vmem:[#allocation2 + $0x1f0] sm:$0xff]
        %v332 = vld [vmem:[#allocation2 + $0x1f8] sm:$0xff]
        %s333 = scalar_lea.vmem %s1, 8
        %v334 = vld [vmem:[%s333] sm:$0xff]
        %v336 = vsel %vm241, %v334, 0
        %338 = vmatpush.msra.mxu0 0.0
        %339 = vmatpush.msra.mxu0 0.0
        %340 = vmatpush.msra.mxu0 0.0
        %341 = vmatpush.msra.mxu0 0.0
        %342 = vmatpush.msra.mxu0 0.0
        %343 = vmatpush.msra.mxu0 0.0
        %344 = vmatpush.msra.mxu0 0.0
        %345 = vmatpush.msra.mxu0 0.0
        %346 = vmatpush.msra.mxu0 0.0
        %347 = vmatpush.msra.mxu0 0.0
        %348 = vmatpush.msra.mxu0 0.0
        %349 = vmatpush.msra.mxu0 0.0
        %350 = vmatpush.msra.mxu0 0.0
        %351 = vmatpush.msra.mxu0 0.0
        %352 = vmatpush.msra.mxu0 0.0
        %353 = vmatpush.msra.mxu0 %v247
        %354 = vmatmul.f32.gmra.mxu0 %v336
        %v355 = vpop.f32.mrf.mxu0
        %v356 = vadd.f32 0.0, %v355
        %357 = vdwg.mxu0
        %s358 = scalar_lea.vmem [#allocation2], 512
        %v359 = vld [vmem:[%s358] sm:$0xff]
        %v360 = vld [vmem:[%s358 + $0x8] sm:$0xff]
        %v361 = vld [vmem:[%s358 + $0x10] sm:$0xff]
        %v362 = vld [vmem:[%s358 + $0x18] sm:$0xff]
        %v363 = vld [vmem:[%s358 + $0x20] sm:$0xff]
        %v364 = vld [vmem:[%s358 + $0x28] sm:$0xff]
        %v365 = vld [vmem:[%s358 + $0x30] sm:$0xff]
        %v366 = vld [vmem:[%s358 + $0x38] sm:$0xff]
        %v367 = vld [vmem:[%s358 + $0x40] sm:$0xff]
        %v368 = vld [vmem:[%s358 + $0x48] sm:$0xff]
        %v369 = vld [vmem:[%s358 + $0x50] sm:$0xff]
        %v370 = vld [vmem:[%s358 + $0x58] sm:$0xff]
        %v371 = vld [vmem:[%s358 + $0x60] sm:$0xff]
        %v372 = vld [vmem:[%s358 + $0x68] sm:$0xff]
        %v373 = vld [vmem:[%s358 + $0x70] sm:$0xff]
        %v374 = vld [vmem:[%s358 + $0x78] sm:$0xff]
        %v375 = vld [vmem:[%s358 + $0x80] sm:$0xff]
        %v376 = vld [vmem:[%s358 + $0x88] sm:$0xff]
        %v377 = vld [vmem:[%s358 + $0x90] sm:$0xff]
        %v378 = vld [vmem:[%s358 + $0x98] sm:$0xff]
        %v379 = vld [vmem:[%s358 + $0xa0] sm:$0xff]
        %v380 = vld [vmem:[%s358 + $0xa8] sm:$0xff]
        %v381 = vld [vmem:[%s358 + $0xb0] sm:$0xff]
        %v382 = vld [vmem:[%s358 + $0xb8] sm:$0xff]
        %v383 = vld [vmem:[%s358 + $0xc0] sm:$0xff]
        %v384 = vld [vmem:[%s358 + $0xc8] sm:$0xff]
        %v385 = vld [vmem:[%s358 + $0xd0] sm:$0xff]
        %v386 = vld [vmem:[%s358 + $0xd8] sm:$0xff]
        %v387 = vld [vmem:[%s358 + $0xe0] sm:$0xff]
        %v388 = vld [vmem:[%s358 + $0xe8] sm:$0xff]
        %v389 = vld [vmem:[%s358 + $0xf0] sm:$0xff]
        %v390 = vld [vmem:[%s358 + $0xf8] sm:$0xff]
        %v391 = vld [vmem:[%s358 + $0x100] sm:$0xff]
        %v392 = vld [vmem:[%s358 + $0x108] sm:$0xff]
        %v393 = vld [vmem:[%s358 + $0x110] sm:$0xff]
        %v394 = vld [vmem:[%s358 + $0x118] sm:$0xff]
        %v395 = vld [vmem:[%s358 + $0x120] sm:$0xff]
        %v396 = vld [vmem:[%s358 + $0x128] sm:$0xff]
        %v397 = vld [vmem:[%s358 + $0x130] sm:$0xff]
        %v398 = vld [vmem:[%s358 + $0x138] sm:$0xff]
        %v399 = vld [vmem:[%s358 + $0x140] sm:$0xff]
        %v400 = vld [vmem:[%s358 + $0x148] sm:$0xff]
        %v401 = vld [vmem:[%s358 + $0x150] sm:$0xff]
        %v402 = vld [vmem:[%s358 + $0x158] sm:$0xff]
        %v403 = vld [vmem:[%s358 + $0x160] sm:$0xff]
        %v404 = vld [vmem:[%s358 + $0x168] sm:$0xff]
        %v405 = vld [vmem:[%s358 + $0x170] sm:$0xff]
        %v406 = vld [vmem:[%s358 + $0x178] sm:$0xff]
        %v407 = vld [vmem:[%s358 + $0x180] sm:$0xff]
        %v408 = vld [vmem:[%s358 + $0x188] sm:$0xff]
        %v409 = vld [vmem:[%s358 + $0x190] sm:$0xff]
        %v410 = vld [vmem:[%s358 + $0x198] sm:$0xff]
        %v411 = vld [vmem:[%s358 + $0x1a0] sm:$0xff]
        %v412 = vld [vmem:[%s358 + $0x1a8] sm:$0xff]
        %v413 = vld [vmem:[%s358 + $0x1b0] sm:$0xff]
        %v414 = vld [vmem:[%s358 + $0x1b8] sm:$0xff]
        %v415 = vld [vmem:[%s358 + $0x1c0] sm:$0xff]
        %v416 = vld [vmem:[%s358 + $0x1c8] sm:$0xff]
        %v417 = vld [vmem:[%s358 + $0x1d0] sm:$0xff]
        %v418 = vld [vmem:[%s358 + $0x1d8] sm:$0xff]
        %v419 = vld [vmem:[%s358 + $0x1e0] sm:$0xff]
        %v420 = vld [vmem:[%s358 + $0x1e8] sm:$0xff]
        %v421 = vld [vmem:[%s358 + $0x1f0] sm:$0xff]
        %v422 = vld [vmem:[%s358 + $0x1f8] sm:$0xff]
        %423 = vmatpush.msra.mxu0 %v419
        %424 = vmatpush.msra.mxu0 %v415
        %425 = vmatpush.msra.mxu0 %v411
        %426 = vmatpush.msra.mxu0 %v407
        %427 = vmatpush.msra.mxu0 %v403
        %428 = vmatpush.msra.mxu0 %v399
        %429 = vmatpush.msra.mxu0 %v395
        %430 = vmatpush.msra.mxu0 %v391
        %431 = vmatpush.msra.mxu0 %v387
        %432 = vmatpush.msra.mxu0 %v383
        %433 = vmatpush.msra.mxu0 %v379
        %434 = vmatpush.msra.mxu0 %v375
        %435 = vmatpush.msra.mxu0 %v371
        %436 = vmatpush.msra.mxu0 %v367
        %437 = vmatpush.msra.mxu0 %v363
        %438 = vmatpush.msra.mxu0 %v359
        %439 = vmatmul.f32.gmra.mxu0 %v356
        %v440 = vpop.f32.mrf.mxu0
        %v441 = vadd.f32 0.0, %v440
        %442 = vdwg.mxu0
        %443 = vmatpush.msra.mxu0 %v420
        %444 = vmatpush.msra.mxu0 %v416
        %445 = vmatpush.msra.mxu0 %v412
        %446 = vmatpush.msra.mxu0 %v408
        %447 = vmatpush.msra.mxu0 %v404
        %448 = vmatpush.msra.mxu0 %v400
        %449 = vmatpush.msra.mxu0 %v396
        %450 = vmatpush.msra.mxu0 %v392
        %451 = vmatpush.msra.mxu0 %v388
        %452 = vmatpush.msra.mxu0 %v384
        %453 = vmatpush.msra.mxu0 %v380
        %454 = vmatpush.msra.mxu0 %v376
        %455 = vmatpush.msra.mxu0 %v372
        %456 = vmatpush.msra.mxu0 %v368
        %457 = vmatpush.msra.mxu0 %v364
        %458 = vmatpush.msra.mxu0 %v360
        %459 = vmatmul.f32.gmra.mxu0 %v356
        %v460 = vpop.f32.mrf.mxu0
        %v461 = vadd.f32 0.0, %v460
        %462 = vdwg.mxu0
        %463 = vmatpush.msra.mxu0 %v421
        %464 = vmatpush.msra.mxu0 %v417
        %465 = vmatpush.msra.mxu0 %v413
        %466 = vmatpush.msra.mxu0 %v409
        %467 = vmatpush.msra.mxu0 %v405
        %468 = vmatpush.msra.mxu0 %v401
        %469 = vmatpush.msra.mxu0 %v397
        %470 = vmatpush.msra.mxu0 %v393
        %471 = vmatpush.msra.mxu0 %v389
        %472 = vmatpush.msra.mxu0 %v385
        %473 = vmatpush.msra.mxu0 %v381
        %474 = vmatpush.msra.mxu0 %v377
        %475 = vmatpush.msra.mxu0 %v373
        %476 = vmatpush.msra.mxu0 %v369
        %477 = vmatpush.msra.mxu0 %v365
        %478 = vmatpush.msra.mxu0 %v361
        %479 = vmatmul.f32.gmra.mxu0 %v356
        %v480 = vpop.f32.mrf.mxu0
        %v481 = vadd.f32 0.0, %v480
        %482 = vdwg.mxu0
        %483 = vmatpush.msra.mxu0 %v422
        %484 = vmatpush.msra.mxu0 %v418
        %485 = vmatpush.msra.mxu0 %v414
        %486 = vmatpush.msra.mxu0 %v410
        %487 = vmatpush.msra.mxu0 %v406
        %488 = vmatpush.msra.mxu0 %v402
        %489 = vmatpush.msra.mxu0 %v398
        %490 = vmatpush.msra.mxu0 %v394
        %491 = vmatpush.msra.mxu0 %v390
        %492 = vmatpush.msra.mxu0 %v386
        %493 = vmatpush.msra.mxu0 %v382
        %494 = vmatpush.msra.mxu0 %v378
        %495 = vmatpush.msra.mxu0 %v374
        %496 = vmatpush.msra.mxu0 %v370
        %497 = vmatpush.msra.mxu0 %v366
        %498 = vmatpush.msra.mxu0 %v362
        %499 = vmatmul.f32.gmra.mxu0 %v356
        %v500 = vpop.f32.mrf.mxu0
        %v501 = vadd.f32 0.0, %v500
        %502 = vdwg.mxu0
        %503 = vmatpush.msra.mxu0 %v329
        %504 = vmatpush.msra.mxu0 %v325
        %505 = vmatpush.msra.mxu0 %v321
        %506 = vmatpush.msra.mxu0 %v317
        %507 = vmatpush.msra.mxu0 %v313
        %508 = vmatpush.msra.mxu0 %v309
        %509 = vmatpush.msra.mxu0 %v305
        %510 = vmatpush.msra.mxu0 %v301
        %511 = vmatpush.msra.mxu0 %v297
        %512 = vmatpush.msra.mxu0 %v293
        %513 = vmatpush.msra.mxu0 %v289
        %514 = vmatpush.msra.mxu0 %v285
        %515 = vmatpush.msra.mxu0 %v281
        %516 = vmatpush.msra.mxu0 %v277
        %517 = vmatpush.msra.mxu0 %v273
        %518 = vmatpush.msra.mxu0 %v269
        %519 = vmatmul.f32.gmra.mxu0 %v267
        %v520 = vpop.f32.mrf.mxu0
        %v521 = vadd.f32 %v441, %v520
        %522 = vdwg.mxu0
        %523 = vmatpush.msra.mxu0 %v330
        %524 = vmatpush.msra.mxu0 %v326
        %525 = vmatpush.msra.mxu0 %v322
        %526 = vmatpush.msra.mxu0 %v318
        %527 = vmatpush.msra.mxu0 %v314
        %528 = vmatpush.msra.mxu0 %v310
        %529 = vmatpush.msra.mxu0 %v306
        %530 = vmatpush.msra.mxu0 %v302
        %531 = vmatpush.msra.mxu0 %v298
        %532 = vmatpush.msra.mxu0 %v294
        %533 = vmatpush.msra.mxu0 %v290
        %534 = vmatpush.msra.mxu0 %v286
        %535 = vmatpush.msra.mxu0 %v282
        %536 = vmatpush.msra.mxu0 %v278
        %537 = vmatpush.msra.mxu0 %v274
        %538 = vmatpush.msra.mxu0 %v270
        %539 = vmatmul.f32.gmra.mxu0 %v267
        %v540 = vpop.f32.mrf.mxu0
        %v541 = vadd.f32 %v461, %v540
        %542 = vdwg.mxu0
        %543 = vmatpush.msra.mxu0 %v331
        %544 = vmatpush.msra.mxu0 %v327
        %545 = vmatpush.msra.mxu0 %v323
        %546 = vmatpush.msra.mxu0 %v319
        %547 = vmatpush.msra.mxu0 %v315
        %548 = vmatpush.msra.mxu0 %v311
        %549 = vmatpush.msra.mxu0 %v307
        %550 = vmatpush.msra.mxu0 %v303
        %551 = vmatpush.msra.mxu0 %v299
        %552 = vmatpush.msra.mxu0 %v295
        %553 = vmatpush.msra.mxu0 %v291
        %554 = vmatpush.msra.mxu0 %v287
        %555 = vmatpush.msra.mxu0 %v283
        %556 = vmatpush.msra.mxu0 %v279
        %557 = vmatpush.msra.mxu0 %v275
        %558 = vmatpush.msra.mxu0 %v271
        %559 = vmatmul.f32.gmra.mxu0 %v267
        %v560 = vpop.f32.mrf.mxu0
        %v561 = vadd.f32 %v481, %v560
        %562 = vdwg.mxu0
        %563 = vmatpush.msra.mxu0 %v332
        %564 = vmatpush.msra.mxu0 %v328
        %565 = vmatpush.msra.mxu0 %v324
        %566 = vmatpush.msra.mxu0 %v320
        %567 = vmatpush.msra.mxu0 %v316
        %568 = vmatpush.msra.mxu0 %v312
        %569 = vmatpush.msra.mxu0 %v308
        %570 = vmatpush.msra.mxu0 %v304
        %571 = vmatpush.msra.mxu0 %v300
        %572 = vmatpush.msra.mxu0 %v296
        %573 = vmatpush.msra.mxu0 %v292
        %574 = vmatpush.msra.mxu0 %v288
        %575 = vmatpush.msra.mxu0 %v284
        %576 = vmatpush.msra.mxu0 %v280
        %577 = vmatpush.msra.mxu0 %v276
        %578 = vmatpush.msra.mxu0 %v272
        %579 = vmatmul.f32.gmra.mxu0 %v267
        %v580 = vpop.f32.mrf.mxu0
        %v581 = vadd.f32 %v501, %v580
        %582 = vdwg.mxu0
        %s583 = scalar_lea.vmem %s1, 16
        %v584 = vld [vmem:[%s583] sm:$0xff]
        %v586 = vsel %vm241, %v584, 0
        %588 = vmatpush.msra.mxu0 0.0
        %589 = vmatpush.msra.mxu0 0.0
        %590 = vmatpush.msra.mxu0 0.0
        %591 = vmatpush.msra.mxu0 0.0
        %592 = vmatpush.msra.mxu0 0.0
        %593 = vmatpush.msra.mxu0 0.0
        %594 = vmatpush.msra.mxu0 0.0
        %595 = vmatpush.msra.mxu0 0.0
        %596 = vmatpush.msra.mxu0 0.0
        %597 = vmatpush.msra.mxu0 0.0
        %598 = vmatpush.msra.mxu0 0.0
        %599 = vmatpush.msra.mxu0 0.0
        %600 = vmatpush.msra.mxu0 0.0
        %601 = vmatpush.msra.mxu0 0.0
        %602 = vmatpush.msra.mxu0 0.0
        %603 = vmatpush.msra.mxu0 %v247
        %604 = vmatmul.f32.gmra.mxu0 %v586
        %v605 = vpop.f32.mrf.mxu0
        %v606 = vadd.f32 0.0, %v605
        %607 = vdwg.mxu0
        %s608 = scalar_lea.vmem [#allocation2], 1024
        %v609 = vld [vmem:[%s608] sm:$0xff]
        %v610 = vld [vmem:[%s608 + $0x8] sm:$0xff]
        %v611 = vld [vmem:[%s608 + $0x10] sm:$0xff]
        %v612 = vld [vmem:[%s608 + $0x18] sm:$0xff]
        %v613 = vld [vmem:[%s608 + $0x20] sm:$0xff]
        %v614 = vld [vmem:[%s608 + $0x28] sm:$0xff]
        %v615 = vld [vmem:[%s608 + $0x30] sm:$0xff]
        %v616 = vld [vmem:[%s608 + $0x38] sm:$0xff]
        %v617 = vld [vmem:[%s608 + $0x40] sm:$0xff]
        %v618 = vld [vmem:[%s608 + $0x48] sm:$0xff]
        %v619 = vld [vmem:[%s608 + $0x50] sm:$0xff]
        %v620 = vld [vmem:[%s608 + $0x58] sm:$0xff]
        %v621 = vld [vmem:[%s608 + $0x60] sm:$0xff]
        %v622 = vld [vmem:[%s608 + $0x68] sm:$0xff]
        %v623 = vld [vmem:[%s608 + $0x70] sm:$0xff]
        %v624 = vld [vmem:[%s608 + $0x78] sm:$0xff]
        %v625 = vld [vmem:[%s608 + $0x80] sm:$0xff]
        %v626 = vld [vmem:[%s608 + $0x88] sm:$0xff]
        %v627 = vld [vmem:[%s608 + $0x90] sm:$0xff]
        %v628 = vld [vmem:[%s608 + $0x98] sm:$0xff]
        %v629 = vld [vmem:[%s608 + $0xa0] sm:$0xff]
        %v630 = vld [vmem:[%s608 + $0xa8] sm:$0xff]
        %v631 = vld [vmem:[%s608 + $0xb0] sm:$0xff]
        %v632 = vld [vmem:[%s608 + $0xb8] sm:$0xff]
        %v633 = vld [vmem:[%s608 + $0xc0] sm:$0xff]
        %v634 = vld [vmem:[%s608 + $0xc8] sm:$0xff]
        %v635 = vld [vmem:[%s608 + $0xd0] sm:$0xff]
        %v636 = vld [vmem:[%s608 + $0xd8] sm:$0xff]
        %v637 = vld [vmem:[%s608 + $0xe0] sm:$0xff]
        %v638 = vld [vmem:[%s608 + $0xe8] sm:$0xff]
        %v639 = vld [vmem:[%s608 + $0xf0] sm:$0xff]
        %v640 = vld [vmem:[%s608 + $0xf8] sm:$0xff]
        %v641 = vld [vmem:[%s608 + $0x100] sm:$0xff]
        %v642 = vld [vmem:[%s608 + $0x108] sm:$0xff]
        %v643 = vld [vmem:[%s608 + $0x110] sm:$0xff]
        %v644 = vld [vmem:[%s608 + $0x118] sm:$0xff]
        %v645 = vld [vmem:[%s608 + $0x120] sm:$0xff]
        %v646 = vld [vmem:[%s608 + $0x128] sm:$0xff]
        %v647 = vld [vmem:[%s608 + $0x130] sm:$0xff]
        %v648 = vld [vmem:[%s608 + $0x138] sm:$0xff]
        %v649 = vld [vmem:[%s608 + $0x140] sm:$0xff]
        %v650 = vld [vmem:[%s608 + $0x148] sm:$0xff]
        %v651 = vld [vmem:[%s608 + $0x150] sm:$0xff]
        %v652 = vld [vmem:[%s608 + $0x158] sm:$0xff]
        %v653 = vld [vmem:[%s608 + $0x160] sm:$0xff]
        %v654 = vld [vmem:[%s608 + $0x168] sm:$0xff]
        %v655 = vld [vmem:[%s608 + $0x170] sm:$0xff]
        %v656 = vld [vmem:[%s608 + $0x178] sm:$0xff]
        %v657 = vld [vmem:[%s608 + $0x180] sm:$0xff]
        %v658 = vld [vmem:[%s608 + $0x188] sm:$0xff]
        %v659 = vld [vmem:[%s608 + $0x190] sm:$0xff]
        %v660 = vld [vmem:[%s608 + $0x198] sm:$0xff]
        %v661 = vld [vmem:[%s608 + $0x1a0] sm:$0xff]
        %v662 = vld [vmem:[%s608 + $0x1a8] sm:$0xff]
        %v663 = vld [vmem:[%s608 + $0x1b0] sm:$0xff]
        %v664 = vld [vmem:[%s608 + $0x1b8] sm:$0xff]
        %v665 = vld [vmem:[%s608 + $0x1c0] sm:$0xff]
        %v666 = vld [vmem:[%s608 + $0x1c8] sm:$0xff]
        %v667 = vld [vmem:[%s608 + $0x1d0] sm:$0xff]
        %v668 = vld [vmem:[%s608 + $0x1d8] sm:$0xff]
        %v669 = vld [vmem:[%s608 + $0x1e0] sm:$0xff]
        %v670 = vld [vmem:[%s608 + $0x1e8] sm:$0xff]
        %v671 = vld [vmem:[%s608 + $0x1f0] sm:$0xff]
        %v672 = vld [vmem:[%s608 + $0x1f8] sm:$0xff]
        %673 = vmatpush.msra.mxu0 %v669
        %674 = vmatpush.msra.mxu0 %v665
        %675 = vmatpush.msra.mxu0 %v661
        %676 = vmatpush.msra.mxu0 %v657
        %677 = vmatpush.msra.mxu0 %v653
        %678 = vmatpush.msra.mxu0 %v649
        %679 = vmatpush.msra.mxu0 %v645
        %680 = vmatpush.msra.mxu0 %v641
        %681 = vmatpush.msra.mxu0 %v637
        %682 = vmatpush.msra.mxu0 %v633
        %683 = vmatpush.msra.mxu0 %v629
        %684 = vmatpush.msra.mxu0 %v625
        %685 = vmatpush.msra.mxu0 %v621
        %686 = vmatpush.msra.mxu0 %v617
        %687 = vmatpush.msra.mxu0 %v613
        %688 = vmatpush.msra.mxu0 %v609
        %689 = vmatmul.f32.gmra.mxu0 %v606
        %v690 = vpop.f32.mrf.mxu0
        %v691 = vadd.f32 0.0, %v690
        %692 = vdwg.mxu0
        %693 = vmatpush.msra.mxu0 %v670
        %694 = vmatpush.msra.mxu0 %v666
        %695 = vmatpush.msra.mxu0 %v662
        %696 = vmatpush.msra.mxu0 %v658
        %697 = vmatpush.msra.mxu0 %v654
        %698 = vmatpush.msra.mxu0 %v650
        %699 = vmatpush.msra.mxu0 %v646
        %700 = vmatpush.msra.mxu0 %v642
        %701 = vmatpush.msra.mxu0 %v638
        %702 = vmatpush.msra.mxu0 %v634
        %703 = vmatpush.msra.mxu0 %v630
        %704 = vmatpush.msra.mxu0 %v626
        %705 = vmatpush.msra.mxu0 %v622
        %706 = vmatpush.msra.mxu0 %v618
        %707 = vmatpush.msra.mxu0 %v614
        %708 = vmatpush.msra.mxu0 %v610
        %709 = vmatmul.f32.gmra.mxu0 %v606
        %v710 = vpop.f32.mrf.mxu0
        %v711 = vadd.f32 0.0, %v710
        %712 = vdwg.mxu0
        %713 = vmatpush.msra.mxu0 %v671
        %714 = vmatpush.msra.mxu0 %v667
        %715 = vmatpush.msra.mxu0 %v663
        %716 = vmatpush.msra.mxu0 %v659
        %717 = vmatpush.msra.mxu0 %v655
        %718 = vmatpush.msra.mxu0 %v651
        %719 = vmatpush.msra.mxu0 %v647
        %720 = vmatpush.msra.mxu0 %v643
        %721 = vmatpush.msra.mxu0 %v639
        %722 = vmatpush.msra.mxu0 %v635
        %723 = vmatpush.msra.mxu0 %v631
        %724 = vmatpush.msra.mxu0 %v627
        %725 = vmatpush.msra.mxu0 %v623
        %726 = vmatpush.msra.mxu0 %v619
        %727 = vmatpush.msra.mxu0 %v615
        %728 = vmatpush.msra.mxu0 %v611
        %729 = vmatmul.f32.gmra.mxu0 %v606
        %v730 = vpop.f32.mrf.mxu0
        %v731 = vadd.f32 0.0, %v730
        %732 = vdwg.mxu0
        %733 = vmatpush.msra.mxu0 %v672
        %734 = vmatpush.msra.mxu0 %v668
        %735 = vmatpush.msra.mxu0 %v664
        %736 = vmatpush.msra.mxu0 %v660
        %737 = vmatpush.msra.mxu0 %v656
        %738 = vmatpush.msra.mxu0 %v652
        %739 = vmatpush.msra.mxu0 %v648
        %740 = vmatpush.msra.mxu0 %v644
        %741 = vmatpush.msra.mxu0 %v640
        %742 = vmatpush.msra.mxu0 %v636
        %743 = vmatpush.msra.mxu0 %v632
        %744 = vmatpush.msra.mxu0 %v628
        %745 = vmatpush.msra.mxu0 %v624
        %746 = vmatpush.msra.mxu0 %v620
        %747 = vmatpush.msra.mxu0 %v616
        %748 = vmatpush.msra.mxu0 %v612
        %749 = vmatmul.f32.gmra.mxu0 %v606
        %v750 = vpop.f32.mrf.mxu0
        %v751 = vadd.f32 0.0, %v750
        %752 = vdwg.mxu0
        %v753 = vadd.f32 %v521, %v691
        %v754 = vadd.f32 %v541, %v711
        %v755 = vadd.f32 %v561, %v731
        %v756 = vadd.f32 %v581, %v751
        %s757 = scalar_lea.vmem %s1, 24
        %v758 = vld [vmem:[%s757] sm:$0xff]
        %v760 = vsel %vm241, %v758, 0
        %762 = vmatpush.msra.mxu0 0.0
        %763 = vmatpush.msra.mxu0 0.0
        %764 = vmatpush.msra.mxu0 0.0
        %765 = vmatpush.msra.mxu0 0.0
        %766 = vmatpush.msra.mxu0 0.0
        %767 = vmatpush.msra.mxu0 0.0
        %768 = vmatpush.msra.mxu0 0.0
        %769 = vmatpush.msra.mxu0 0.0
        %770 = vmatpush.msra.mxu0 0.0
        %771 = vmatpush.msra.mxu0 0.0
        %772 = vmatpush.msra.mxu0 0.0
        %773 = vmatpush.msra.mxu0 0.0
        %774 = vmatpush.msra.mxu0 0.0
        %775 = vmatpush.msra.mxu0 0.0
        %776 = vmatpush.msra.mxu0 0.0
        %777 = vmatpush.msra.mxu0 %v247
        %778 = vmatmul.f32.gmra.mxu0 %v760
        %v779 = vpop.f32.mrf.mxu0
        %v780 = vadd.f32 0.0, %v779
        %781 = vdwg.mxu0
        %s782 = scalar_lea.vmem [#allocation2], 1536
        %v783 = vld [vmem:[%s782] sm:$0xff]
        %v784 = vld [vmem:[%s782 + $0x8] sm:$0xff]
        %v785 = vld [vmem:[%s782 + $0x10] sm:$0xff]
        %v786 = vld [vmem:[%s782 + $0x18] sm:$0xff]
        %v787 = vld [vmem:[%s782 + $0x20] sm:$0xff]
        %v788 = vld [vmem:[%s782 + $0x28] sm:$0xff]
        %v789 = vld [vmem:[%s782 + $0x30] sm:$0xff]
        %v790 = vld [vmem:[%s782 + $0x38] sm:$0xff]
        %v791 = vld [vmem:[%s782 + $0x40] sm:$0xff]
        %v792 = vld [vmem:[%s782 + $0x48] sm:$0xff]
        %v793 = vld [vmem:[%s782 + $0x50] sm:$0xff]
        %v794 = vld [vmem:[%s782 + $0x58] sm:$0xff]
        %v795 = vld [vmem:[%s782 + $0x60] sm:$0xff]
        %v796 = vld [vmem:[%s782 + $0x68] sm:$0xff]
        %v797 = vld [vmem:[%s782 + $0x70] sm:$0xff]
        %v798 = vld [vmem:[%s782 + $0x78] sm:$0xff]
        %v799 = vld [vmem:[%s782 + $0x80] sm:$0xff]
        %v800 = vld [vmem:[%s782 + $0x88] sm:$0xff]
        %v801 = vld [vmem:[%s782 + $0x90] sm:$0xff]
        %v802 = vld [vmem:[%s782 + $0x98] sm:$0xff]
        %v803 = vld [vmem:[%s782 + $0xa0] sm:$0xff]
        %v804 = vld [vmem:[%s782 + $0xa8] sm:$0xff]
        %v805 = vld [vmem:[%s782 + $0xb0] sm:$0xff]
        %v806 = vld [vmem:[%s782 + $0xb8] sm:$0xff]
        %v807 = vld [vmem:[%s782 + $0xc0] sm:$0xff]
        %v808 = vld [vmem:[%s782 + $0xc8] sm:$0xff]
        %v809 = vld [vmem:[%s782 + $0xd0] sm:$0xff]
        %v810 = vld [vmem:[%s782 + $0xd8] sm:$0xff]
        %v811 = vld [vmem:[%s782 + $0xe0] sm:$0xff]
        %v812 = vld [vmem:[%s782 + $0xe8] sm:$0xff]
        %v813 = vld [vmem:[%s782 + $0xf0] sm:$0xff]
        %v814 = vld [vmem:[%s782 + $0xf8] sm:$0xff]
        %v815 = vld [vmem:[%s782 + $0x100] sm:$0xff]
        %v816 = vld [vmem:[%s782 + $0x108] sm:$0xff]
        %v817 = vld [vmem:[%s782 + $0x110] sm:$0xff]
        %v818 = vld [vmem:[%s782 + $0x118] sm:$0xff]
        %v819 = vld [vmem:[%s782 + $0x120] sm:$0xff]
        %v820 = vld [vmem:[%s782 + $0x128] sm:$0xff]
        %v821 = vld [vmem:[%s782 + $0x130] sm:$0xff]
        %v822 = vld [vmem:[%s782 + $0x138] sm:$0xff]
        %v823 = vld [vmem:[%s782 + $0x140] sm:$0xff]
        %v824 = vld [vmem:[%s782 + $0x148] sm:$0xff]
        %v825 = vld [vmem:[%s782 + $0x150] sm:$0xff]
        %v826 = vld [vmem:[%s782 + $0x158] sm:$0xff]
        %v827 = vld [vmem:[%s782 + $0x160] sm:$0xff]
        %v828 = vld [vmem:[%s782 + $0x168] sm:$0xff]
        %v829 = vld [vmem:[%s782 + $0x170] sm:$0xff]
        %v830 = vld [vmem:[%s782 + $0x178] sm:$0xff]
        %v831 = vld [vmem:[%s782 + $0x180] sm:$0xff]
        %v832 = vld [vmem:[%s782 + $0x188] sm:$0xff]
        %v833 = vld [vmem:[%s782 + $0x190] sm:$0xff]
        %v834 = vld [vmem:[%s782 + $0x198] sm:$0xff]
        %v835 = vld [vmem:[%s782 + $0x1a0] sm:$0xff]
        %v836 = vld [vmem:[%s782 + $0x1a8] sm:$0xff]
        %v837 = vld [vmem:[%s782 + $0x1b0] sm:$0xff]
        %v838 = vld [vmem:[%s782 + $0x1b8] sm:$0xff]
        %v839 = vld [vmem:[%s782 + $0x1c0] sm:$0xff]
        %v840 = vld [vmem:[%s782 + $0x1c8] sm:$0xff]
        %v841 = vld [vmem:[%s782 + $0x1d0] sm:$0xff]
        %v842 = vld [vmem:[%s782 + $0x1d8] sm:$0xff]
        %v843 = vld [vmem:[%s782 + $0x1e0] sm:$0xff]
        %v844 = vld [vmem:[%s782 + $0x1e8] sm:$0xff]
        %v845 = vld [vmem:[%s782 + $0x1f0] sm:$0xff]
        %v846 = vld [vmem:[%s782 + $0x1f8] sm:$0xff]
        %847 = vmatpush.msra.mxu0 %v843
        %848 = vmatpush.msra.mxu0 %v839
        %849 = vmatpush.msra.mxu0 %v835
        %850 = vmatpush.msra.mxu0 %v831
        %851 = vmatpush.msra.mxu0 %v827
        %852 = vmatpush.msra.mxu0 %v823
        %853 = vmatpush.msra.mxu0 %v819
        %854 = vmatpush.msra.mxu0 %v815
        %855 = vmatpush.msra.mxu0 %v811
        %856 = vmatpush.msra.mxu0 %v807
        %857 = vmatpush.msra.mxu0 %v803
        %858 = vmatpush.msra.mxu0 %v799
        %859 = vmatpush.msra.mxu0 %v795
        %860 = vmatpush.msra.mxu0 %v791
        %861 = vmatpush.msra.mxu0 %v787
        %862 = vmatpush.msra.mxu0 %v783
        %863 = vmatmul.f32.gmra.mxu0 %v780
        %v864 = vpop.f32.mrf.mxu0
        %v865 = vadd.f32 0.0, %v864
        %866 = vdwg.mxu0
        %867 = vmatpush.msra.mxu0 %v844
        %868 = vmatpush.msra.mxu0 %v840
        %869 = vmatpush.msra.mxu0 %v836
        %870 = vmatpush.msra.mxu0 %v832
        %871 = vmatpush.msra.mxu0 %v828
        %872 = vmatpush.msra.mxu0 %v824
        %873 = vmatpush.msra.mxu0 %v820
        %874 = vmatpush.msra.mxu0 %v816
        %875 = vmatpush.msra.mxu0 %v812
        %876 = vmatpush.msra.mxu0 %v808
        %877 = vmatpush.msra.mxu0 %v804
        %878 = vmatpush.msra.mxu0 %v800
        %879 = vmatpush.msra.mxu0 %v796
        %880 = vmatpush.msra.mxu0 %v792
        %881 = vmatpush.msra.mxu0 %v788
        %882 = vmatpush.msra.mxu0 %v784
        %883 = vmatmul.f32.gmra.mxu0 %v780
        %v884 = vpop.f32.mrf.mxu0
        %v885 = vadd.f32 0.0, %v884
        %886 = vdwg.mxu0
        %887 = vmatpush.msra.mxu0 %v845
        %888 = vmatpush.msra.mxu0 %v841
        %889 = vmatpush.msra.mxu0 %v837
        %890 = vmatpush.msra.mxu0 %v833
        %891 = vmatpush.msra.mxu0 %v829
        %892 = vmatpush.msra.mxu0 %v825
        %893 = vmatpush.msra.mxu0 %v821
        %894 = vmatpush.msra.mxu0 %v817
        %895 = vmatpush.msra.mxu0 %v813
        %896 = vmatpush.msra.mxu0 %v809
        %897 = vmatpush.msra.mxu0 %v805
        %898 = vmatpush.msra.mxu0 %v801
        %899 = vmatpush.msra.mxu0 %v797
        %900 = vmatpush.msra.mxu0 %v793
        %901 = vmatpush.msra.mxu0 %v789
        %902 = vmatpush.msra.mxu0 %v785
        %903 = vmatmul.f32.gmra.mxu0 %v780
        %v904 = vpop.f32.mrf.mxu0
        %v905 = vadd.f32 0.0, %v904
        %906 = vdwg.mxu0
        %907 = vmatpush.msra.mxu0 %v846
        %908 = vmatpush.msra.mxu0 %v842
        %909 = vmatpush.msra.mxu0 %v838
        %910 = vmatpush.msra.mxu0 %v834
        %911 = vmatpush.msra.mxu0 %v830
        %912 = vmatpush.msra.mxu0 %v826
        %913 = vmatpush.msra.mxu0 %v822
        %914 = vmatpush.msra.mxu0 %v818
        %915 = vmatpush.msra.mxu0 %v814
        %916 = vmatpush.msra.mxu0 %v810
        %917 = vmatpush.msra.mxu0 %v806
        %918 = vmatpush.msra.mxu0 %v802
        %919 = vmatpush.msra.mxu0 %v798
        %920 = vmatpush.msra.mxu0 %v794
        %921 = vmatpush.msra.mxu0 %v790
        %922 = vmatpush.msra.mxu0 %v786
        %923 = vmatmul.f32.gmra.mxu0 %v780
        %v924 = vpop.f32.mrf.mxu0
        %v925 = vadd.f32 0.0, %v924
        %926 = vdwg.mxu0
        %v927 = vadd.f32 %v753, %v865
        %v928 = vadd.f32 %v754, %v885
        %v929 = vadd.f32 %v755, %v905
        %v930 = vadd.f32 %v756, %v925
        %v931 = vld [vmem:[%s3] sm:$0xff]
        %933 = vset.pattern.permute.xlu0 0
        %934 = vperm.xlu0 %933, %v931
        %v935 = vpop.permute.xlu0 %934
        %v937 = vadd.f32 %v927, %v935
        %v938 = vadd.f32 %v928, %v935
        %v939 = vadd.f32 %v929, %v935
        %v940 = vadd.f32 %v930, %v935
        %v941 = vmax.f32 %v937, 0.0
        %v942 = vmax.f32 %v938, 0.0
        %v943 = vmax.f32 %v939, 0.0
        %v944 = vmax.f32 %v940, 0.0
        %945 = vst [vmem:[%s229] sm:$0xff] %v941
        %946 = vst [vmem:[%s229 + $0x8] sm:$0xff] %v942
        %947 = vst [vmem:[%s229 + $0x10] sm:$0xff] %v943
        %948 = vst [vmem:[%s229 + $0x18] sm:$0xff] %v944
        %s949 = sand.u32 %s132, 1
        %s950 = scalar_lea.sflag [#allocation4], %s949
        %s951 = sand.u32 %s132, 1
        %s952 = smul.addr %s951, 32
        %s953 = scalar_lea.vmem [#allocation5], %s952
        // Predicated region
        $region41: #{tpu_custom_call.1} parent=35 // pred_check
          %p954 = pneg %p142
        $region42: #{tpu_custom_call.1} parent=35 // pred_check_branch
          %956 = sbr.rel (%p954) target = $region44
        $region43: #{tpu_custom_call.1} parent=35 // pred_region
          %s957 = smul.u32 4, %s24
          %959 = vsyncadd %s950, 0
          %s960 = smul.addr %s23, 8
          %s961 = sadd.s32 %s957, %s960
          %s962 = smul.addr %s961, 8
          %s963 = scalar_lea.hbm %s4, %s962
          %s965 = sshll.u32 %s953, 4
          %s966 = int_to_ptr.vmem [resolvable:$true] %s965
          %s967 = sshll.u32 %s963, 4
          %s968 = int_to_ptr.hbm [resolvable:$true] %s967
          %970 = dma.vmem_to_hbm [thread:$0]  %s966, 512, %s968, %s950
        $region44: #{tpu_custom_call.1} parent=35 // pred_fallthru
          _
      $region36: #{tpu_custom_call.1} parent=5 // pred_fallthru
        _
      %p971 = scmp.le.s32.totalorder 2, %s14
      // Predicated region
      $region45: #{tpu_custom_call.1} parent=5 // pred_check
        %p972 = pneg %p971
      $region46: #{tpu_custom_call.1} parent=5 // pred_check_branch
        %974 = sbr.rel (%p972) target = $region48
      $region47: #{tpu_custom_call.1} parent=5 // pred_region
        %s975 = ssub.s32 %s14, 2
        // Predicated region
        $region49: #{tpu_custom_call.1} parent=47 // pred_check
          %p976 = pneg %p148
        $region50: #{tpu_custom_call.1} parent=47 // pred_check_branch
          %978 = sbr.rel (%p976) target = $region52
        $region51: #{tpu_custom_call.1} parent=47 // pred_region
          %s979 = sand.u32 %s133, 1
          %s980 = scalar_lea.sflag [#allocation4], %s979
          %s981 = sand.u32 %s133, 1
          %s982 = smul.addr %s981, 32
          %s983 = scalar_lea.vmem [#allocation5], %s982
          %985 = dma.done %s980, 512
        $region52: #{tpu_custom_call.1} parent=47 // pred_fallthru
          _
      $region48: #{tpu_custom_call.1} parent=5 // pred_fallthru
        _
    $region6: #{tpu_custom_call.1} parent=1 // loop_footer
      %s18 = sadd.s32 1, %s14
    $region7: #{tpu_custom_call.1} parent=1 // loop_footer_branch
      %13 = sbr.rel target = $region3
    $region8: #{tpu_custom_call.1} parent=1 // loop_exit
      _
    %986 = vsyncpa [#allocation3], 1
    %s987 = scalar_lea.sflag [#allocation3], 1
    %988 = vsyncpa %s987, 1
    %989 = vsyncpa [#allocation4], 1
    %s990 = scalar_lea.sflag [#allocation4], 1
    %991 = vsyncpa %s990, 1

</llo_original>
